<compile_context>
chip_gen: v5e
topology: v5e:2x2
jax: 0.10.0
libtpu: 0.0.40
codegen_flags: <defaults>
</compile_context>

<pallas_src>
import functools

import jax
import jax.numpy as jnp
from jax import lax
from jax.experimental import pallas as pl
from jax.experimental.pallas import tpu as pltpu

DROPOUT_P = 0.2
N_EMBED = 128          # small stand-in for 384 (still lane-aligned: multiple of 128)


def _round_up(x, m):
    return (x + m - 1) // m * m


def _uniform_bits(shape, row_offset_u32, seed_u32):
    """Counter-based uint32 hash (murmur3 finalizer), one value per element.

    Built from pure jnp integer ops -> lowers on TPU and in interpret mode.
    The counter is the *global* (row, col) index, so the mask is independent
    of the row tiling.
    """
    r = lax.broadcasted_iota(jnp.int32, shape, 0).astype(jnp.uint32)
    c = lax.broadcasted_iota(jnp.int32, shape, 1).astype(jnp.uint32)
    x = (r + row_offset_u32) * jnp.uint32(shape[1]) + c        # global counter
    x = x + seed_u32 * jnp.uint32(0x9E3779B9)
    x = x ^ (x >> 16)
    x = x * jnp.uint32(0x7FEB352D)
    x = x ^ (x >> 15)
    x = x * jnp.uint32(0x846CA68B)
    x = x ^ (x >> 16)
    return x


def _ffn_kernel(seed_ref, x_ref, w1_ref, b1_ref, w2_ref, b2_ref, o_ref,
                *, p_drop, training, tm, hc):
    # bf16 MXU operands, f32 accumulation.  If x is already bf16 this cast is
    # a no-op (no extra work for bf16 callers).
    xb = x_ref[...].astype(jnp.bfloat16)
    n_chunks = w1_ref.shape[1] // hc

    # Static (unrolled) loop over hidden chunks: Linear1 + ReLU on a (tm, hc)
    # slab, immediately folded into the (tm, C) f32 accumulator via Linear2.
    # Keeps the live intermediate small so tm can be large on v7x's 64 MiB
    # VMEM while every matmul keeps K/N >= 128.
    y = None
    for hk in range(n_chunks):
        lo = hk * hc
        h = jnp.dot(xb, w1_ref[:, lo:lo + hc],
                    preferred_element_type=jnp.float32)
        h = jnp.maximum(h + b1_ref[:, lo:lo + hc], 0.0)       # (tm,hc)+(1,hc)
        part = jnp.dot(h.astype(jnp.bfloat16), w2_ref[lo:lo + hc, :],
                       preferred_element_type=jnp.float32)
        y = part if y is None else y + part
    y = y + b2_ref[...]                                        # (tm,C)+(1,C)

    if training and p_drop > 0.0:
        # Inverted dropout: keep <=> bits >= p_drop * 2^32 (one int compare +
        # select per element; hides under MXU/DMA slack at large tm).
        row_off = (pl.program_id(0) * tm).astype(jnp.uint32)
        seed_u32 = seed_ref[0].astype(jnp.uint32)
        bits = _uniform_bits(y.shape, row_off, seed_u32)
        thresh = jnp.uint32(min(int(p_drop * 4294967296.0), 4294967295))
        keep = bits >= thresh
        y = jnp.where(keep, y * (1.0 / (1.0 - p_drop)), 0.0)

    o_ref[...] = y.astype(o_ref.dtype)


def _pick_row_tile(m, target=1024):
    """Row tile (multiple of 8): big enough to amortize the ~0.35us/step grid
    overhead, capped at `target` (v7x VMEM-safe with H chunking), and chosen
    so the grid has >= 2 steps whenever M > 8 (v7x has 2 TensorCores that
    share a "parallel" grid axis; harmless on single-TC v5e/v6e)."""
    if m <= 8:
        return 8
    n_steps = max(2, pl.cdiv(m, target))
    return min(target, _round_up(pl.cdiv(m, n_steps), 8))


def _pick_hidden_chunk(h, target=512):
    """Hidden-dim chunk: <= 512, multiple of 128 dividing H when possible."""
    if h <= target:
        return h
    hc = target
    while hc >= 128:
        if h % hc == 0:
            return hc
        hc -= 128
    return h


def feed_forward(x, w1, b1, w2, b2, *, p_drop=DROPOUT_P, training=False,
                 seed=0, tm=None):
    """x: (B, T, C).  Returns (B, T, C) with x's dtype.

    For best performance pass bf16 x and bf16 weights (casts below are then
    no-ops, so no extra HBM round-trips are added in a training loop).
    """
    B, T, C = x.shape
    H = w1.shape[1]
    assert w1.shape == (C, H) and w2.shape == (H, C)
    assert b1.shape == (H,) and b2.shape == (C,)
    M = B * T
    if tm is None:
        tm = _pick_row_tile(M)
    tm = int(tm)
    hc = int(_pick_hidden_chunk(H))

    # MXU weights in bf16; cast only if the caller did not already hoist it.
    w1b = w1 if w1.dtype == jnp.bfloat16 else w1.astype(jnp.bfloat16)
    w2b = w2 if w2.dtype == jnp.bfloat16 else w2.astype(jnp.bfloat16)
    b1_2d = b1.reshape(1, H).astype(jnp.float32)
    b2_2d = b2.reshape(1, C).astype(jnp.float32)
    seed_arr = jnp.asarray([seed], dtype=jnp.int32)

    xf = x.reshape(M, C)
    M_pad = _round_up(M, tm)
    if M_pad != M:
        # Pad so every block is full -> all stores stay lane/sublane dense
        # (no masked partial stores); pad rows are sliced off below.
        xf = jnp.pad(xf, ((0, M_pad - M), (0, 0)))
    grid = M_pad // tm

    # VMEM budget: double-buffered x/out tiles + resident bf16 weights
    # (default-double-buffered) + biases + chunked intermediates + slack.
    # Clamped so it never asks for more than v7x's 64 MiB physical VMEM.
    act_bytes = jnp.dtype(x.dtype).itemsize
    vmem_bytes = (2 * tm * C * act_bytes        # x tiles (double-buffered)
                  + 2 * tm * C * act_bytes      # out tiles (double-buffered)
                  + 2 * 2 * C * H * 2           # W1 + W2 bf16 (2 buffers each)
                  + 2 * 2 * (H + C) * 4         # biases (2 buffers each)
                  + tm * hc * 6                 # h chunk: f32 + bf16 copy
                  + tm * C * 4                  # f32 accumulator
                  + (8 << 20))                  # compiler temps / spill slack
    vmem_limit = int(min(max(vmem_bytes, 28 << 20), 48 << 20))

    kernel = functools.partial(_ffn_kernel, p_drop=float(p_drop),
                               training=bool(training), tm=tm, hc=hc)

    out = pl.pallas_call(
        kernel,
        out_shape=jax.ShapeDtypeStruct((M_pad, C), x.dtype),
        grid_spec=pl.GridSpec(
            grid=(grid,),
            in_specs=[
                pl.BlockSpec(memory_space=pltpu.SMEM),                 # seed
                pl.BlockSpec((tm, C), lambda i: (i, 0)),               # x tile
                pl.BlockSpec((C, H), lambda i: (0, 0)),                # W1 (resident)
                pl.BlockSpec((1, H), lambda i: (0, 0)),                # b1
                pl.BlockSpec((H, C), lambda i: (0, 0)),                # W2 (resident)
                pl.BlockSpec((1, C), lambda i: (0, 0)),                # b2
            ],
            out_specs=pl.BlockSpec((tm, C), lambda i: (i, 0)),
        ),
        compiler_params=pltpu.CompilerParams(
            dimension_semantics=("parallel",),
            vmem_limit_bytes=vmem_limit),
    )(seed_arr, xf, w1b, b1_2d, w2b, b2_2d)

    if M_pad != M:
        out = out[:M]
    return out.reshape(B, T, C)


def _init_params(key, n_embed):
    """Deterministic init matching nn.Linear's default U(-1/sqrt(fan_in), +)."""
    h = 4 * n_embed
    k1, k2, k3, k4 = jax.random.split(key, 4)
    lim1 = 1.0 / (n_embed ** 0.5)
    lim2 = 1.0 / (h ** 0.5)
    w1 = jax.random.uniform(k1, (n_embed, h), jnp.float32, -lim1, lim1)
    b1 = jax.random.uniform(k2, (h,), jnp.float32, -lim1, lim1)
    w2 = jax.random.uniform(k3, (h, n_embed), jnp.float32, -lim2, lim2)
    b2 = jax.random.uniform(k4, (n_embed,), jnp.float32, -lim2, lim2)
    return w1, b1, w2, b2


def _ffn_reference(x, w1, b1, w2, b2):
    """Pure-JAX reference with the same bf16-operand / f32-accumulate numerics."""
    B, T, C = x.shape
    xb = x.reshape(-1, C).astype(jnp.bfloat16)
    h = jnp.maximum(
        jnp.dot(xb, w1.astype(jnp.bfloat16),
                preferred_element_type=jnp.float32) + b1.astype(jnp.float32), 0.0)
    y = jnp.dot(h.astype(jnp.bfloat16), w2.astype(jnp.bfloat16),
                preferred_element_type=jnp.float32) + b2.astype(jnp.float32)
    return y.reshape(B, T, C).astype(x.dtype)


if __name__ == "__main__":
    key = jax.random.PRNGKey(0)
    k_x, k_p, k_x2, k_p2 = jax.random.split(key, 4)

    # --- Shape 1: B*T = 16 -> tm = 8, grid of 2 (multi-step, megacore-parallel
    # path); H = 512 -> single hidden chunk.
    B, T, C = 2, 8, N_EMBED
    x = jax.random.normal(k_x, (B, T, C), jnp.float32)
    w1, b1, w2, b2 = _init_params(k_p, C)
    # Hoisted one-time weight cast (what a model would store between steps).
    w1b, w2b = w1.astype(jnp.bfloat16), w2.astype(jnp.bfloat16)

    y = jax.block_until_ready(feed_forward(x, w1b, b1, w2b, b2, training=False))
    ref = _ffn_reference(x, w1, b1, w2, b2)
    assert jnp.allclose(y, ref, atol=2e-2, rtol=2e-2), "mismatch vs reference"

    # Training mode exercises the in-kernel hash-RNG dropout.  Each output
    # element must be either 0 (dropped) or the eval output scaled by 1/(1-p).
    # TODO(synk): mask stream differs from torch's RNG (semantics match:
    # inverted dropout with keep-prob 0.8), so it is checked structurally only.
    y_train = jax.block_until_ready(
        feed_forward(x, w1b, b1, w2b, b2, training=True, seed=123))
    scale = 1.0 / (1.0 - DROPOUT_P)
    kept = jnp.isclose(y_train, y * scale, atol=1e-3, rtol=1e-3)
    dropped = jnp.isclose(y_train, 0.0, atol=1e-6)
    assert bool(jnp.all(kept | dropped)), "dropout output not in {0, y/keep_p}"
    assert bool(jnp.any(dropped)), "dropout dropped nothing"

    # --- Shape 2: awkward B*T = 21 with C = 256 (H = 1024 -> 2 hidden chunks):
    # exercises row padding and the chunked-H accumulation path.
    B2, T2, C2 = 3, 7, 256
    x2 = jax.random.normal(k_x2, (B2, T2, C2), jnp.float32)
    w1_2, b1_2, w2_2, b2_2 = _init_params(k_p2, C2)
    y2 = jax.block_until_ready(
        feed_forward(x2, w1_2.astype(jnp.bfloat16), b1_2,
                     w2_2.astype(jnp.bfloat16), b2_2, training=False))
    ref2 = _ffn_reference(x2, w1_2, b1_2, w2_2, b2_2)
    assert jnp.allclose(y2, ref2, atol=2e-2, rtol=2e-2), "mismatch vs reference (padded/chunked)"

    print("KERNEL_OK")
</pallas_src>

<mosaic_0001>
module attributes {stable_mosaic.version = 11 : i64} {
  func.func @_ffn_kernel(%arg0: i32, %arg1: memref<1xi32, #tpu.memory_space<smem>>, %arg2: memref<8x128xf32, #tpu.memory_space<vmem>>, %arg3: memref<128x512xbf16, #tpu.memory_space<vmem>>, %arg4: memref<1x512xf32, #tpu.memory_space<vmem>>, %arg5: memref<512x128xbf16, #tpu.memory_space<vmem>>, %arg6: memref<1x128xf32, #tpu.memory_space<vmem>>, %arg7: memref<8x128xf32, #tpu.memory_space<vmem>>) attributes {dimension_semantics = [#tpu.dimension_semantics<parallel>], iteration_bounds = array<i64: 2>, scalar_prefetch = 0 : i64, scratch_operands = 0 : i64, tpu.core_type = #tpu.core_type<tc>, window_params = [{transform_indices = @transform_0, window_bounds = array<i64: 1>}, {transform_indices = @transform_1, window_bounds = array<i64: 8, 128>}, {pipeline_mode = #tpu.pipeline_mode<synchronous>, transform_indices = @transform_2, window_bounds = array<i64: 128, 512>}, {pipeline_mode = #tpu.pipeline_mode<synchronous>, transform_indices = @transform_3, window_bounds = array<i64: 1, 512>}, {pipeline_mode = #tpu.pipeline_mode<synchronous>, transform_indices = @transform_4, window_bounds = array<i64: 512, 128>}, {pipeline_mode = #tpu.pipeline_mode<synchronous>, transform_indices = @transform_5, window_bounds = array<i64: 1, 128>}, {transform_indices = @transform_6, window_bounds = array<i64: 8, 128>}]} {
    %c0 = arith.constant 0 : index
    %c0_0 = arith.constant 0 : index
    %0 = vector.load %arg2[%c0, %c0_0] : memref<8x128xf32, #tpu.memory_space<vmem>>, vector<8x128xf32>
    %1 = arith.truncf %0 : vector<8x128xf32> to vector<8x128xbf16>
    %c0_1 = arith.constant 0 : index
    %c0_2 = arith.constant 0 : index
    %2 = vector.load %arg3[%c0_1, %c0_2] : memref<128x512xbf16, #tpu.memory_space<vmem>>, vector<128x512xbf16>
    %cst = arith.constant dense<0.000000e+00> : vector<8x512xf32>
    %3 = tpu.matmul %1, %2, %cst {dimension_numbers = #tpu.dot_dimension_numbers<[1], [0], [0], [1], [0, 0, 1, 1], [], []>} : vector<8x128xbf16>, vector<128x512xbf16>, vector<8x512xf32> -> vector<8x512xf32>
    %c0_3 = arith.constant 0 : index
    %c0_4 = arith.constant 0 : index
    %4 = vector.load %arg4[%c0_3, %c0_4] : memref<1x512xf32, #tpu.memory_space<vmem>>, vector<1x512xf32>
    %5 = vector.broadcast %4 : vector<1x512xf32> to vector<8x512xf32>
    %6 = arith.addf %3, %5 : vector<8x512xf32>
    %cst_5 = arith.constant 0.000000e+00 : f32
    %7 = vector.broadcast %cst_5 : f32 to vector<8x512xf32>
    %8 = arith.maximumf %6, %7 : vector<8x512xf32>
    %9 = arith.truncf %8 : vector<8x512xf32> to vector<8x512xbf16>
    %c0_6 = arith.constant 0 : index
    %c0_7 = arith.constant 0 : index
    %10 = vector.load %arg5[%c0_6, %c0_7] : memref<512x128xbf16, #tpu.memory_space<vmem>>, vector<512x128xbf16>
    %cst_8 = arith.constant dense<0.000000e+00> : vector<8x128xf32>
    %11 = tpu.matmul %9, %10, %cst_8 {dimension_numbers = #tpu.dot_dimension_numbers<[1], [0], [0], [1], [0, 0, 1, 1], [], []>} : vector<8x512xbf16>, vector<512x128xbf16>, vector<8x128xf32> -> vector<8x128xf32>
    %c0_9 = arith.constant 0 : index
    %c0_10 = arith.constant 0 : index
    %12 = vector.load %arg6[%c0_9, %c0_10] : memref<1x128xf32, #tpu.memory_space<vmem>>, vector<1x128xf32>
    %13 = vector.broadcast %12 : vector<1x128xf32> to vector<8x128xf32>
    %14 = arith.addf %11, %13 : vector<8x128xf32>
    %c0_11 = arith.constant 0 : index
    %c0_12 = arith.constant 0 : index
    %15 = vector.load %arg7[%c0_11, %c0_12] : memref<8x128xf32, #tpu.memory_space<vmem>>, vector<8x128xf32>
    tpu.vector_store %arg7[%c0_11, %c0_12], %14 {strides = array<i32>} : memref<8x128xf32, #tpu.memory_space<vmem>>, vector<8x128xf32>,
    return
  }
  func.func @transform_0(%arg0: i32) -> i32 {
    %c0_i32 = arith.constant 0 : i32
    %c0_i32_0 = arith.constant 0 : i32
    return %c0_i32 : i32
  }
  func.func @transform_1(%arg0: i32) -> (i32, i32) {
    %c0_i32 = arith.constant 0 : i32
    %c0_i32_0 = arith.constant 0 : i32
    return %arg0, %c0_i32 : i32, i32
  }
  func.func @transform_2(%arg0: i32) -> (i32, i32) {
    %c0_i32 = arith.constant 0 : i32
    %c0_i32_0 = arith.constant 0 : i32
    %c0_i32_1 = arith.constant 0 : i32
    return %c0_i32, %c0_i32_0 : i32, i32
  }
  func.func @transform_3(%arg0: i32) -> (i32, i32) {
    %c0_i32 = arith.constant 0 : i32
    %c0_i32_0 = arith.constant 0 : i32
    %c0_i32_1 = arith.constant 0 : i32
    return %c0_i32, %c0_i32_0 : i32, i32
  }
  func.func @transform_4(%arg0: i32) -> (i32, i32) {
    %c0_i32 = arith.constant 0 : i32
    %c0_i32_0 = arith.constant 0 : i32
    %c0_i32_1 = arith.constant 0 : i32
    return %c0_i32, %c0_i32_0 : i32, i32
  }
  func.func @transform_5(%arg0: i32) -> (i32, i32) {
    %c0_i32 = arith.constant 0 : i32
    %c0_i32_0 = arith.constant 0 : i32
    %c0_i32_1 = arith.constant 0 : i32
    return %c0_i32, %c0_i32_0 : i32, i32
  }
  func.func @transform_6(%arg0: i32) -> (i32, i32) {
    %c0_i32 = arith.constant 0 : i32
    %c0_i32_0 = arith.constant 0 : i32
    return %arg0, %c0_i32 : i32, i32
  }
}

</mosaic_0001>

<llo_original>
// kernel: tpu_custom_call.1
$region0: #{tpu_custom_call.1}
  #allocation0 [shape = 'u32[]', space=smem, size = 0x4, offset = 0x4, fixed_abs, tag = 'smem constant byte address 0x4 - core index']
  #allocation1 [shape = 'u32[72,128]{1,0:T(1,128)}', space=vmem, size = 0x9000, scoped, tag = 'internal scratch']
  #allocation2 [shape = 's32[1]{0:T(128)S(6)}', space=smem, size = 0x200, scoped, tag = 'scoped memory for tpu_custom_call.1']
  %s0 = inlined_call_operand.<no memory space> [shape: s32[1], index: 0, kind: input, shape index: {}]
  %s1 = inlined_call_operand.hbm [shape: f32[16,128], index: 1, kind: input, shape index: {}]
  %s2 = inlined_call_operand.hbm [shape: bf16[128,512], index: 2, kind: input, shape index: {}]
  %s3 = inlined_call_operand.hbm [shape: f32[1,512], index: 3, kind: input, shape index: {}]
  %s4 = inlined_call_operand.hbm [shape: bf16[512,128], index: 4, kind: input, shape index: {}]
  %s5 = inlined_call_operand.vmem [shape: f32[1,128], index: 5, kind: input, shape index: {}]
  %s6 = inlined_call_operand.hbm [shape: f32[16,128], index: 6, kind: output, shape index: {}]
  %s7 = sld [smem:[#allocation0]]
  $region73: #{tpu_custom_call.1} parent=0
    _
  %s9 = ssub.s32 1, %s7
  %s10 = scalar_select 0, %s9, %s7
  %11 = sst [smem:[#allocation2]] %s0
  $region1: #{tpu_custom_call.1} parent=0
    #allocation3 [shape = 'u8[8192]{0}', space=vmem, size = 0x2000, scoped, tag = 'input window, operand 1']
    #allocation4 [shape = 's32[2]{0}', space=sflag, size = 0x8, scoped, tag = 'scoped memory for tpu_custom_call.1']
    #allocation5 [shape = 's32[2]{0}', space=sflag, size = 0x8, scoped, tag = 'scoped memory for tpu_custom_call.1']
    #allocation6 [shape = 'u8[131072]{0}', space=vmem, size = 0x20000, scoped, tag = 'input window, operand 2, single buffered']
    #allocation7 [shape = 's32[1]{0}', space=sflag, size = 0x4, scoped, tag = 'scoped memory for tpu_custom_call.1']
    #allocation8 [shape = 'u8[2048]{0}', space=vmem, size = 0x800, scoped, tag = 'input window, operand 3, single buffered']
    #allocation9 [shape = 'u8[131072]{0}', space=vmem, size = 0x20000, scoped, tag = 'input window, operand 4, single buffered']
    #allocation10 [shape = 's32[1]{0}', space=sflag, size = 0x4, scoped, tag = 'scoped memory for tpu_custom_call.1']
    #allocation11 [shape = 'u8[8192]{0}', space=vmem, size = 0x2000, scoped, tag = 'output window, operand 0']
    %12 = vsyncpa [#allocation4], 0
    %s13 = scalar_lea.sflag [#allocation4], 1
    %14 = vsyncpa %s13, 0
    %15 = vsyncpa [#allocation7], 0
    %16 = vsyncpa [#allocation10], 0
    %17 = vsyncpa [#allocation5], 0
    %s18 = scalar_lea.sflag [#allocation5], 1
    %19 = vsyncpa %s18, 0
    loop: start=0, step=1, limit=4
    $region2: #{tpu_custom_call.1} parent=1 // loop_pre_header
      _
    $region3: #{tpu_custom_call.1} parent=1 // loop_header
      %s21 = sphi 0, %s25
      %p22 = scmp.ge.s32.totalorder %s21, 4
      %s29 = sphi 0, %s29
      %s31 = sphi 0, %s29
      %s32 = sphi 0, %s31
      %s46 = sphi 0, %s32
      %s52 = sphi 0, %s54
      %s55 = sphi 0, %s52
      %s56 = sphi 0, %s55
      %s72 = sphi 0, %s56
      %s76 = sphi 0, %s76
      %s78 = sphi 0, %s76
      %s79 = sphi 0, %s78
      %s93 = sphi 0, %s79
      %s97 = sphi 0, %s97
      %s99 = sphi 0, %s97
      %s100 = sphi 0, %s99
      %s114 = sphi 0, %s100
      %s118 = sphi 0, %s118
      %s120 = sphi 0, %s118
      %s121 = sphi 0, %s120
      %s135 = sphi 0, %s121
      %s139 = sphi 0, %s139
      %s141 = sphi 0, %s139
      %s142 = sphi 0, %s141
      %s156 = sphi 0, %s142
      %s162 = sphi 0, %s164
      %s165 = sphi 0, %s162
      %s166 = sphi 0, %s165
      %s182 = sphi 0, %s166
    $region4: #{tpu_custom_call.1} parent=1 // loop_header_branch
      %24 = sbr.rel (%p22) target = $region8
    $region5: #{tpu_custom_call.1} parent=1 // loop_body
      %s26 = ssub.s32 %s21, 1
      %s27 = ssub.s32 %s21, 2
      %s28 = sadd.s32 %s21, 1
      %s30 = sadd.s32 %s29, 1
      %p33 = scmp.eq.s32.totalorder %s21, 1
      %p34 = scmp.ne.s32.totalorder %s29, %s31
      %p35 = scmp.eq.s32.totalorder %s21, 0
      %p36 = por %p34, %p35
      %p37 = scmp.ne.s32.totalorder %s29, %s31
      %p38 = scmp.eq.s32.totalorder %s26, 1
      %p39 = por %p37, %p38
      %p40 = scmp.ne.s32.totalorder %s31, %s32
      %p41 = scmp.eq.s32.totalorder %s26, 0
      %p42 = por %p40, %p41
      %p43 = scmp.ne.s32.totalorder %s31, %s32
      %p44 = scmp.eq.s32.totalorder %s27, 1
      %p45 = por %p43, %p44
      %p47 = scmp.ne.s32.totalorder %s32, %s46
      %p48 = scmp.eq.s32.totalorder %s27, 0
      %p49 = por %p47, %p48
      %s50 = ssub.s32 %s21, %s28
      %p51 = scmp.eq.s32.totalorder %s50, 0
      %s53 = sadd.s32 %s52, 1
      %s54 = scalar_select %p51, %s52, %s53
      %p57 = pneg %p51
      %p58 = scmp.eq.s32.totalorder %s21, 1
      %p59 = por %p57, %p58
      %p60 = scmp.ne.s32.totalorder %s52, %s55
      %p61 = scmp.eq.s32.totalorder %s21, 0
      %p62 = por %p60, %p61
      %p63 = scmp.ne.s32.totalorder %s52, %s55
      %p64 = scmp.eq.s32.totalorder %s26, 1
      %p65 = por %p63, %p64
      %p66 = scmp.ne.s32.totalorder %s55, %s56
      %p67 = scmp.eq.s32.totalorder %s26, 0
      %p68 = por %p66, %p67
      %p69 = scmp.ne.s32.totalorder %s55, %s56
      %p70 = scmp.eq.s32.totalorder %s27, 1
      %p71 = por %p69, %p70
      %p73 = scmp.ne.s32.totalorder %s56, %s72
      %p74 = scmp.eq.s32.totalorder %s27, 0
      %p75 = por %p73, %p74
      %s77 = sadd.s32 %s76, 1
      %p80 = scmp.eq.s32.totalorder %s21, 1
      %p81 = scmp.ne.s32.totalorder %s76, %s78
      %p82 = scmp.eq.s32.totalorder %s21, 0
      %p83 = por %p81, %p82
      %p84 = scmp.ne.s32.totalorder %s76, %s78
      %p85 = scmp.eq.s32.totalorder %s26, 1
      %p86 = por %p84, %p85
      %p87 = scmp.ne.s32.totalorder %s78, %s79
      %p88 = scmp.eq.s32.totalorder %s26, 0
      %p89 = por %p87, %p88
      %p90 = scmp.ne.s32.totalorder %s78, %s79
      %p91 = scmp.eq.s32.totalorder %s27, 1
      %p92 = por %p90, %p91
      %p94 = scmp.ne.s32.totalorder %s79, %s93
      %p95 = scmp.eq.s32.totalorder %s27, 0
      %p96 = por %p94, %p95
      %s98 = sadd.s32 %s97, 1
      %p101 = scmp.eq.s32.totalorder %s21, 1
      %p102 = scmp.ne.s32.totalorder %s97, %s99
      %p103 = scmp.eq.s32.totalorder %s21, 0
      %p104 = por %p102, %p103
      %p105 = scmp.ne.s32.totalorder %s97, %s99
      %p106 = scmp.eq.s32.totalorder %s26, 1
      %p107 = por %p105, %p106
      %p108 = scmp.ne.s32.totalorder %s99, %s100
      %p109 = scmp.eq.s32.totalorder %s26, 0
      %p110 = por %p108, %p109
      %p111 = scmp.ne.s32.totalorder %s99, %s100
      %p112 = scmp.eq.s32.totalorder %s27, 1
      %p113 = por %p111, %p112
      %p115 = scmp.ne.s32.totalorder %s100, %s114
      %p116 = scmp.eq.s32.totalorder %s27, 0
      %p117 = por %p115, %p116
      %s119 = sadd.s32 %s118, 1
      %p122 = scmp.eq.s32.totalorder %s21, 1
      %p123 = scmp.ne.s32.totalorder %s118, %s120
      %p124 = scmp.eq.s32.totalorder %s21, 0
      %p125 = por %p123, %p124
      %p126 = scmp.ne.s32.totalorder %s118, %s120
      %p127 = scmp.eq.s32.totalorder %s26, 1
      %p128 = por %p126, %p127
      %p129 = scmp.ne.s32.totalorder %s120, %s121
      %p130 = scmp.eq.s32.totalorder %s26, 0
      %p131 = por %p129, %p130
      %p132 = scmp.ne.s32.totalorder %s120, %s121
      %p133 = scmp.eq.s32.totalorder %s27, 1
      %p134 = por %p132, %p133
      %p136 = scmp.ne.s32.totalorder %s121, %s135
      %p137 = scmp.eq.s32.totalorder %s27, 0
      %p138 = por %p136, %p137
      %s140 = sadd.s32 %s139, 1
      %p143 = scmp.eq.s32.totalorder %s21, 1
      %p144 = scmp.ne.s32.totalorder %s139, %s141
      %p145 = scmp.eq.s32.totalorder %s21, 0
      %p146 = por %p144, %p145
      %p147 = scmp.ne.s32.totalorder %s139, %s141
      %p148 = scmp.eq.s32.totalorder %s26, 1
      %p149 = por %p147, %p148
      %p150 = scmp.ne.s32.totalorder %s141, %s142
      %p151 = scmp.eq.s32.totalorder %s26, 0
      %p152 = por %p150, %p151
      %p153 = scmp.ne.s32.totalorder %s141, %s142
      %p154 = scmp.eq.s32.totalorder %s27, 1
      %p155 = por %p153, %p154
      %p157 = scmp.ne.s32.totalorder %s142, %s156
      %p158 = scmp.eq.s32.totalorder %s27, 0
      %p159 = por %p157, %p158
      %s160 = ssub.s32 %s21, %s28
      %p161 = scmp.eq.s32.totalorder %s160, 0
      %s163 = sadd.s32 %s162, 1
      %s164 = scalar_select %p161, %s162, %s163
      %p167 = pneg %p161
      %p168 = scmp.eq.s32.totalorder %s21, 1
      %p169 = por %p167, %p168
      %p170 = scmp.ne.s32.totalorder %s162, %s165
      %p171 = scmp.eq.s32.totalorder %s21, 0
      %p172 = por %p170, %p171
      %p173 = scmp.ne.s32.totalorder %s162, %s165
      %p174 = scmp.eq.s32.totalorder %s26, 1
      %p175 = por %p173, %p174
      %p176 = scmp.ne.s32.totalorder %s165, %s166
      %p177 = scmp.eq.s32.totalorder %s26, 0
      %p178 = por %p176, %p177
      %p179 = scmp.ne.s32.totalorder %s165, %s166
      %p180 = scmp.eq.s32.totalorder %s27, 1
      %p181 = por %p179, %p180
      %p183 = scmp.ne.s32.totalorder %s166, %s182
      %p184 = scmp.eq.s32.totalorder %s27, 0
      %p185 = por %p183, %p184
      %p186 = scmp.le.s32.totalorder 1, %s21
      %p187 = scmp.lt.s32.totalorder %s21, 3
      %p188 = pnand %p186, %p187
      %p189 = pneg %p188
      // Predicated region
      $region9: #{tpu_custom_call.1} parent=5 // pred_check
        _
      $region10: #{tpu_custom_call.1} parent=5 // pred_check_branch
        %191 = sbr.rel (%p188) target = $region12
      $region11: #{tpu_custom_call.1} parent=5 // pred_region
        %s192 = ssub.s32 %s21, 1
        // Predicated region
        $region13: #{tpu_custom_call.1} parent=11 // pred_check
          %p193 = pneg %p42
        $region14: #{tpu_custom_call.1} parent=11 // pred_check_branch
          %195 = sbr.rel (%p193) target = $region16
        $region15: #{tpu_custom_call.1} parent=11 // pred_region
          _
        $region16: #{tpu_custom_call.1} parent=11 // pred_fallthru
          _
        // Predicated region
        $region17: #{tpu_custom_call.1} parent=11 // pred_check
          %p196 = pneg %p89
        $region18: #{tpu_custom_call.1} parent=11 // pred_check_branch
          %198 = sbr.rel (%p196) target = $region20
        $region19: #{tpu_custom_call.1} parent=11 // pred_region
          %200 = vsyncadd [#allocation7], 0
          %s201 = sshll.u32 %s2, 4
          %s202 = int_to_ptr.hbm [resolvable:$true] %s201
          %s203 = sshll.u32 [#allocation6], 4
          %s204 = int_to_ptr.vmem [resolvable:$true] %s203
          %209 = dma.hbm_to_vmem [thread:$0]  %s202, 4096, %s204, [#allocation7], 256, 256, 16
        $region20: #{tpu_custom_call.1} parent=11 // pred_fallthru
          _
        // Predicated region
        $region21: #{tpu_custom_call.1} parent=11 // pred_check
          %p210 = pneg %p110
        $region22: #{tpu_custom_call.1} parent=11 // pred_check_branch
          %212 = sbr.rel (%p210) target = $region24
        $region23: #{tpu_custom_call.1} parent=11 // pred_region
          %214 = vsyncadd [#allocation7], 0
          %s216 = sshll.u32 %s3, 4
          %s217 = int_to_ptr.hbm [resolvable:$true] %s216
          %s218 = sshll.u32 [#allocation8], 4
          %s219 = int_to_ptr.vmem [resolvable:$true] %s218
          %221 = dma.hbm_to_vmem [thread:$0]  %s217, 64, %s219, [#allocation7]
        $region24: #{tpu_custom_call.1} parent=11 // pred_fallthru
          _
        // Predicated region
        $region25: #{tpu_custom_call.1} parent=11 // pred_check
          %p222 = pneg %p131
        $region26: #{tpu_custom_call.1} parent=11 // pred_check_branch
          %224 = sbr.rel (%p222) target = $region28
        $region27: #{tpu_custom_call.1} parent=11 // pred_region
          %226 = vsyncadd [#allocation10], 0
          %s227 = sshll.u32 %s4, 4
          %s228 = int_to_ptr.hbm [resolvable:$true] %s227
          %s229 = sshll.u32 [#allocation9], 4
          %s230 = int_to_ptr.vmem [resolvable:$true] %s229
          %235 = dma.hbm_to_vmem [thread:$0]  %s228, 4096, %s230, [#allocation10], 64, 64, 4
        $region28: #{tpu_custom_call.1} parent=11 // pred_fallthru
          _
        // Predicated region
        $region29: #{tpu_custom_call.1} parent=11 // pred_check
          %p236 = pneg %p152
        $region30: #{tpu_custom_call.1} parent=11 // pred_check_branch
          %238 = sbr.rel (%p236) target = $region32
        $region31: #{tpu_custom_call.1} parent=11 // pred_region
          _
        $region32: #{tpu_custom_call.1} parent=11 // pred_fallthru
          _
      $region12: #{tpu_custom_call.1} parent=5 // pred_fallthru
        _
      %p239 = scmp.lt.s32.totalorder %s21, 2
      // Predicated region
      $region33: #{tpu_custom_call.1} parent=5 // pred_check
        %p240 = pneg %p239
      $region34: #{tpu_custom_call.1} parent=5 // pred_check_branch
        %242 = sbr.rel (%p240) target = $region36
      $region35: #{tpu_custom_call.1} parent=5 // pred_region
        // Predicated region
        $region37: #{tpu_custom_call.1} parent=35 // pred_check
          %p243 = pneg %p62
        $region38: #{tpu_custom_call.1} parent=35 // pred_check_branch
          %245 = sbr.rel (%p243) target = $region40
        $region39: #{tpu_custom_call.1} parent=35 // pred_region
          %s246 = sand.u32 %s52, 1
          %s247 = scalar_lea.sflag [#allocation4], %s246
          %s248 = sand.u32 %s52, 1
          %s249 = smul.addr %s248, 8
          %s250 = scalar_lea.vmem [#allocation3], %s249
          %252 = vsyncadd %s247, 0
          %s253 = smul.addr %s21, 8
          %s254 = scalar_lea.hbm %s1, %s253
          %s256 = sshll.u32 %s254, 4
          %s257 = int_to_ptr.hbm [resolvable:$true] %s256
          %s258 = sshll.u32 %s250, 4
          %s259 = int_to_ptr.vmem [resolvable:$true] %s258
          %261 = dma.hbm_to_vmem [thread:$0]  %s257, 128, %s259, %s247
        $region40: #{tpu_custom_call.1} parent=35 // pred_fallthru
          _
      $region36: #{tpu_custom_call.1} parent=5 // pred_fallthru
        _
      %p262 = scmp.le.s32.totalorder 1, %s21
      %p263 = scmp.lt.s32.totalorder %s21, 3
      %p264 = pnand %p262, %p263
      %p265 = pneg %p264
      // Predicated region
      $region41: #{tpu_custom_call.1} parent=5 // pred_check
        _
      $region42: #{tpu_custom_call.1} parent=5 // pred_check_branch
        %267 = sbr.rel (%p264) target = $region44
      $region43: #{tpu_custom_call.1} parent=5 // pred_region
        %s268 = ssub.s32 %s21, 1
        %s269 = sand.u32 %s55, 1
        %s270 = scalar_lea.sflag [#allocation4], %s269
        %s271 = sand.u32 %s55, 1
        %s272 = smul.addr %s271, 8
        %s273 = scalar_lea.vmem [#allocation3], %s272
        // Predicated region
        $region45: #{tpu_custom_call.1} parent=43 // pred_check
          %p274 = pneg %p68
        $region46: #{tpu_custom_call.1} parent=43 // pred_check_branch
          %276 = sbr.rel (%p274) target = $region48
        $region47: #{tpu_custom_call.1} parent=43 // pred_region
          %278 = dma.done %s270, 128
        $region48: #{tpu_custom_call.1} parent=43 // pred_fallthru
          _
        // Predicated region
        $region49: #{tpu_custom_call.1} parent=43 // pred_check
          %p279 = pneg %p89
        $region50: #{tpu_custom_call.1} parent=43 // pred_check_branch
          %281 = sbr.rel (%p279) target = $region52
        $region51: #{tpu_custom_call.1} parent=43 // pred_region
          %283 = dma.done [#allocation7], 4096
        $region52: #{tpu_custom_call.1} parent=43 // pred_fallthru
          _
        // Predicated region
        $region53: #{tpu_custom_call.1} parent=43 // pred_check
          %p284 = pneg %p110
        $region54: #{tpu_custom_call.1} parent=43 // pred_check_branch
          %286 = sbr.rel (%p284) target = $region56
        $region55: #{tpu_custom_call.1} parent=43 // pred_region
          %288 = dma.done [#allocation7], 64
        $region56: #{tpu_custom_call.1} parent=43 // pred_fallthru
          _
        // Predicated region
        $region57: #{tpu_custom_call.1} parent=43 // pred_check
          %p289 = pneg %p131
        $region58: #{tpu_custom_call.1} parent=43 // pred_check_branch
          %291 = sbr.rel (%p289) target = $region60
        $region59: #{tpu_custom_call.1} parent=43 // pred_region
          %293 = dma.done [#allocation10], 4096
        $region60: #{tpu_custom_call.1} parent=43 // pred_fallthru
          _
        %p294 = pneg %p42
        %p295 = pneg %p39
        %s296 = sand.u32 %s55, 1
        %s297 = scalar_lea.sflag [#allocation4], %s296
        %s298 = sand.u32 %s55, 1
        %s299 = smul.addr %s298, 8
        %s300 = scalar_lea.vmem [#allocation3], %s299
        %p301 = pneg %p68
        %p302 = pneg %p65
        %p303 = pneg %p89
        %p304 = pneg %p86
        %p305 = pneg %p110
        %p306 = pneg %p107
        %p307 = pneg %p131
        %p308 = pneg %p128
        %p309 = pneg %p152
        %p310 = pneg %p149
        %p311 = pneg %p178
        %p312 = pneg %p175
        %s313 = sand.u32 %s165, 1
        %s314 = scalar_lea.sflag [#allocation5], %s313
        %s315 = sand.u32 %s165, 1
        %s316 = smul.addr %s315, 8
        %s317 = scalar_lea.vmem [#allocation11], %s316
        %v318 = vld [vmem:[%s273] sm:$0xff]
        %v319 = vpack.c.bf16 %v318, %v318
        %v320 = vld [vmem:[#allocation6] sm:$0xff]
        %v321 = vld [vmem:[#allocation6 + $0x8] sm:$0xff]
        %v322 = vld [vmem:[#allocation6 + $0x10] sm:$0xff]
        %v323 = vld [vmem:[#allocation6 + $0x18] sm:$0xff]
        %v324 = vld [vmem:[#allocation6 + $0x20] sm:$0xff]
        %v325 = vld [vmem:[#allocation6 + $0x28] sm:$0xff]
        %v326 = vld [vmem:[#allocation6 + $0x30] sm:$0xff]
        %v327 = vld [vmem:[#allocation6 + $0x38] sm:$0xff]
        %v328 = vld [vmem:[#allocation6 + $0x40] sm:$0xff]
        %v329 = vld [vmem:[#allocation6 + $0x48] sm:$0xff]
        %v330 = vld [vmem:[#allocation6 + $0x50] sm:$0xff]
        %v331 = vld [vmem:[#allocation6 + $0x58] sm:$0xff]
        %v332 = vld [vmem:[#allocation6 + $0x60] sm:$0xff]
        %v333 = vld [vmem:[#allocation6 + $0x68] sm:$0xff]
        %v334 = vld [vmem:[#allocation6 + $0x70] sm:$0xff]
        %v335 = vld [vmem:[#allocation6 + $0x78] sm:$0xff]
        %v336 = vld [vmem:[#allocation6 + $0x80] sm:$0xff]
        %v337 = vld [vmem:[#allocation6 + $0x88] sm:$0xff]
        %v338 = vld [vmem:[#allocation6 + $0x90] sm:$0xff]
        %v339 = vld [vmem:[#allocation6 + $0x98] sm:$0xff]
        %v340 = vld [vmem:[#allocation6 + $0xa0] sm:$0xff]
        %v341 = vld [vmem:[#allocation6 + $0xa8] sm:$0xff]
        %v342 = vld [vmem:[#allocation6 + $0xb0] sm:$0xff]
        %v343 = vld [vmem:[#allocation6 + $0xb8] sm:$0xff]
        %v344 = vld [vmem:[#allocation6 + $0xc0] sm:$0xff]
        %v345 = vld [vmem:[#allocation6 + $0xc8] sm:$0xff]
        %v346 = vld [vmem:[#allocation6 + $0xd0] sm:$0xff]
        %v347 = vld [vmem:[#allocation6 + $0xd8] sm:$0xff]
        %v348 = vld [vmem:[#allocation6 + $0xe0] sm:$0xff]
        %v349 = vld [vmem:[#allocation6 + $0xe8] sm:$0xff]
        %v350 = vld [vmem:[#allocation6 + $0xf0] sm:$0xff]
        %v351 = vld [vmem:[#allocation6 + $0xf8] sm:$0xff]
        %v352 = vld [vmem:[#allocation8] sm:$0xf]
        %v354 = vperm.slane %v352, 0
        %v355 = vperm.slane %v352, 1
        %v356 = vperm.slane %v352, 2
        %v357 = vperm.slane %v352, 3
        %v394 = vunpack.c.l.b16 %v320
        %v395 = vunpack.c.h.b16 %v320
        %v396 = vunpack.c.l.b16 %v321
        %v397 = vunpack.c.h.b16 %v321
        %v398 = vunpack.c.l.b16 %v322
        %v399 = vunpack.c.h.b16 %v322
        %v400 = vunpack.c.l.b16 %v323
        %v401 = vunpack.c.h.b16 %v323
        %v402 = vunpack.c.l.b16 %v324
        %v403 = vunpack.c.h.b16 %v324
        %v404 = vunpack.c.l.b16 %v325
        %v405 = vunpack.c.h.b16 %v325
        %v406 = vunpack.c.l.b16 %v326
        %v407 = vunpack.c.h.b16 %v326
        %v408 = vunpack.c.l.b16 %v327
        %v409 = vunpack.c.h.b16 %v327
        %v410 = vunpack.c.l.b16 %v328
        %v411 = vunpack.c.h.b16 %v328
        %v412 = vunpack.c.l.b16 %v329
        %v413 = vunpack.c.h.b16 %v329
        %v414 = vunpack.c.l.b16 %v330
        %v415 = vunpack.c.h.b16 %v330
        %v416 = vunpack.c.l.b16 %v331
        %v417 = vunpack.c.h.b16 %v331
        %v418 = vunpack.c.l.b16 %v332
        %v419 = vunpack.c.h.b16 %v332
        %v420 = vunpack.c.l.b16 %v333
        %v421 = vunpack.c.h.b16 %v333
        %v422 = vunpack.c.l.b16 %v334
        %v423 = vunpack.c.h.b16 %v334
        %v424 = vunpack.c.l.b16 %v335
        %v425 = vunpack.c.h.b16 %v335
        %v426 = vunpack.c.l.b16 %v336
        %v427 = vunpack.c.h.b16 %v336
        %v428 = vunpack.c.l.b16 %v337
        %v429 = vunpack.c.h.b16 %v337
        %v430 = vunpack.c.l.b16 %v338
        %v431 = vunpack.c.h.b16 %v338
        %v432 = vunpack.c.l.b16 %v339
        %v433 = vunpack.c.h.b16 %v339
        %v434 = vunpack.c.l.b16 %v340
        %v435 = vunpack.c.h.b16 %v340
        %v436 = vunpack.c.l.b16 %v341
        %v437 = vunpack.c.h.b16 %v341
        %v438 = vunpack.c.l.b16 %v342
        %v439 = vunpack.c.h.b16 %v342
        %v440 = vunpack.c.l.b16 %v343
        %v441 = vunpack.c.h.b16 %v343
        %v442 = vunpack.c.l.b16 %v344
        %v443 = vunpack.c.h.b16 %v344
        %v444 = vunpack.c.l.b16 %v345
        %v445 = vunpack.c.h.b16 %v345
        %v446 = vunpack.c.l.b16 %v346
        %v447 = vunpack.c.h.b16 %v346
        %v448 = vunpack.c.l.b16 %v347
        %v449 = vunpack.c.h.b16 %v347
        %v450 = vunpack.c.l.b16 %v348
        %v451 = vunpack.c.h.b16 %v348
        %v452 = vunpack.c.l.b16 %v349
        %v453 = vunpack.c.h.b16 %v349
        %v454 = vunpack.c.l.b16 %v350
        %v455 = vunpack.c.h.b16 %v350
        %v456 = vunpack.c.l.b16 %v351
        %v457 = vunpack.c.h.b16 %v351
        %v458 = vpack.c.b16 %v398, %v394
        %v459 = vpack.c.b16 %v399, %v395
        %v460 = vpack.c.b16 %v400, %v396
        %v461 = vpack.c.b16 %v401, %v397
        %v462 = vpack.c.b16 %v406, %v402
        %v463 = vpack.c.b16 %v407, %v403
        %v464 = vpack.c.b16 %v408, %v404
        %v465 = vpack.c.b16 %v409, %v405
        %v466 = vpack.c.b16 %v414, %v410
        %v467 = vpack.c.b16 %v415, %v411
        %v468 = vpack.c.b16 %v416, %v412
        %v469 = vpack.c.b16 %v417, %v413
        %v470 = vpack.c.b16 %v422, %v418
        %v471 = vpack.c.b16 %v423, %v419
        %v472 = vpack.c.b16 %v424, %v420
        %v473 = vpack.c.b16 %v425, %v421
        %v474 = vpack.c.b16 %v430, %v426
        %v475 = vpack.c.b16 %v431, %v427
        %v476 = vpack.c.b16 %v432, %v428
        %v477 = vpack.c.b16 %v433, %v429
        %v478 = vpack.c.b16 %v438, %v434
        %v479 = vpack.c.b16 %v439, %v435
        %v480 = vpack.c.b16 %v440, %v436
        %v481 = vpack.c.b16 %v441, %v437
        %v482 = vpack.c.b16 %v446, %v442
        %v483 = vpack.c.b16 %v447, %v443
        %v484 = vpack.c.b16 %v448, %v444
        %v485 = vpack.c.b16 %v449, %v445
        %v486 = vpack.c.b16 %v454, %v450
        %v487 = vpack.c.b16 %v455, %v451
        %v488 = vpack.c.b16 %v456, %v452
        %v489 = vpack.c.b16 %v457, %v453
        %522 = vmatpush.bf16.msra.mxu0 %v486
        %523 = vmatpush.bf16.msra.mxu0 %v482
        %524 = vmatpush.bf16.msra.mxu0 %v478
        %525 = vmatpush.bf16.msra.mxu0 %v474
        %526 = vmatpush.bf16.msra.mxu0 %v470
        %527 = vmatpush.bf16.msra.mxu0 %v466
        %528 = vmatpush.bf16.msra.mxu0 %v462
        %529 = vmatpush.bf16.msra.mxu0 %v458
        %530 = vmatmul.bf16.gmra.mxu0 %v319
        %v531 = vpop.f32.mrf.mxu0
        %v532 = vadd.f32 %v354, %v531
        %v533 = vpop.f32.mrf.mxu0
        %534 = vdwg.mxu0
        %535 = vmatpush.bf16.msra.mxu0 %v487
        %536 = vmatpush.bf16.msra.mxu0 %v483
        %537 = vmatpush.bf16.msra.mxu0 %v479
        %538 = vmatpush.bf16.msra.mxu0 %v475
        %539 = vmatpush.bf16.msra.mxu0 %v471
        %540 = vmatpush.bf16.msra.mxu0 %v467
        %541 = vmatpush.bf16.msra.mxu0 %v463
        %542 = vmatpush.bf16.msra.mxu0 %v459
        %543 = vmatmul.bf16.gmra.mxu0 %v319
        %v544 = vpop.f32.mrf.mxu0
        %v545 = vadd.f32 %v355, %v544
        %v546 = vpop.f32.mrf.mxu0
        %547 = vdwg.mxu0
        %548 = vmatpush.bf16.msra.mxu0 %v488
        %549 = vmatpush.bf16.msra.mxu0 %v484
        %550 = vmatpush.bf16.msra.mxu0 %v480
        %551 = vmatpush.bf16.msra.mxu0 %v476
        %552 = vmatpush.bf16.msra.mxu0 %v472
        %553 = vmatpush.bf16.msra.mxu0 %v468
        %554 = vmatpush.bf16.msra.mxu0 %v464
        %555 = vmatpush.bf16.msra.mxu0 %v460
        %556 = vmatmul.bf16.gmra.mxu0 %v319
        %v557 = vpop.f32.mrf.mxu0
        %v558 = vadd.f32 %v356, %v557
        %v559 = vpop.f32.mrf.mxu0
        %560 = vdwg.mxu0
        %561 = vmatpush.bf16.msra.mxu0 %v489
        %562 = vmatpush.bf16.msra.mxu0 %v485
        %563 = vmatpush.bf16.msra.mxu0 %v481
        %564 = vmatpush.bf16.msra.mxu0 %v477
        %565 = vmatpush.bf16.msra.mxu0 %v473
        %566 = vmatpush.bf16.msra.mxu0 %v469
        %567 = vmatpush.bf16.msra.mxu0 %v465
        %568 = vmatpush.bf16.msra.mxu0 %v461
        %569 = vmatmul.bf16.gmra.mxu0 %v319
        %v570 = vpop.f32.mrf.mxu0
        %v571 = vadd.f32 %v357, %v570
        %v572 = vpop.f32.mrf.mxu0
        %573 = vdwg.mxu0
        %v574 = vmax.f32 %v532, 0.0
        %v575 = vmax.f32 %v545, 0.0
        %v576 = vmax.f32 %v558, 0.0
        %v577 = vmax.f32 %v571, 0.0
        %v578 = vpack.c.bf16 %v574, %v574
        %v579 = vpack.c.bf16 %v575, %v575
        %v580 = vpack.c.bf16 %v576, %v576
        %v581 = vpack.c.bf16 %v577, %v577
        %v582 = vld [vmem:[#allocation9] sm:$0xf]
        %v583 = vld [vmem:[#allocation9 + $0x4] sm:$0xf]
        %v584 = vld [vmem:[#allocation9 + $0x8] sm:$0xf]
        %v585 = vld [vmem:[#allocation9 + $0xc] sm:$0xf]
        %v586 = vld [vmem:[#allocation9 + $0x10] sm:$0xf]
        %v587 = vld [vmem:[#allocation9 + $0x14] sm:$0xf]
        %v588 = vld [vmem:[#allocation9 + $0x18] sm:$0xf]
        %v589 = vld [vmem:[#allocation9 + $0x1c] sm:$0xf]
        %v590 = vld [vmem:[#allocation9 + $0x20] sm:$0xf]
        %v591 = vld [vmem:[#allocation9 + $0x24] sm:$0xf]
        %v592 = vld [vmem:[#allocation9 + $0x28] sm:$0xf]
        %v593 = vld [vmem:[#allocation9 + $0x2c] sm:$0xf]
        %v594 = vld [vmem:[#allocation9 + $0x30] sm:$0xf]
        %v595 = vld [vmem:[#allocation9 + $0x34] sm:$0xf]
        %v596 = vld [vmem:[#allocation9 + $0x38] sm:$0xf]
        %v597 = vld [vmem:[#allocation9 + $0x3c] sm:$0xf]
        %v598 = vld [vmem:[#allocation9 + $0x40] sm:$0xf]
        %v599 = vld [vmem:[#allocation9 + $0x44] sm:$0xf]
        %v600 = vld [vmem:[#allocation9 + $0x48] sm:$0xf]
        %v601 = vld [vmem:[#allocation9 + $0x4c] sm:$0xf]
        %v602 = vld [vmem:[#allocation9 + $0x50] sm:$0xf]
        %v603 = vld [vmem:[#allocation9 + $0x54] sm:$0xf]
        %v604 = vld [vmem:[#allocation9 + $0x58] sm:$0xf]
        %v605 = vld [vmem:[#allocation9 + $0x5c] sm:$0xf]
        %v606 = vld [vmem:[#allocation9 + $0x60] sm:$0xf]
        %v607 = vld [vmem:[#allocation9 + $0x64] sm:$0xf]
        %v608 = vld [vmem:[#allocation9 + $0x68] sm:$0xf]
        %v609 = vld [vmem:[#allocation9 + $0x6c] sm:$0xf]
        %v610 = vld [vmem:[#allocation9 + $0x70] sm:$0xf]
        %v611 = vld [vmem:[#allocation9 + $0x74] sm:$0xf]
        %v612 = vld [vmem:[#allocation9 + $0x78] sm:$0xf]
        %v613 = vld [vmem:[#allocation9 + $0x7c] sm:$0xf]
        %v614 = vld [vmem:[#allocation9 + $0x80] sm:$0xf]
        %v615 = vld [vmem:[#allocation9 + $0x84] sm:$0xf]
        %v616 = vld [vmem:[#allocation9 + $0x88] sm:$0xf]
        %v617 = vld [vmem:[#allocation9 + $0x8c] sm:$0xf]
        %v618 = vld [vmem:[#allocation9 + $0x90] sm:$0xf]
        %v619 = vld [vmem:[#allocation9 + $0x94] sm:$0xf]
        %v620 = vld [vmem:[#allocation9 + $0x98] sm:$0xf]
        %v621 = vld [vmem:[#allocation9 + $0x9c] sm:$0xf]
        %v622 = vld [vmem:[#allocation9 + $0xa0] sm:$0xf]
        %v623 = vld [vmem:[#allocation9 + $0xa4] sm:$0xf]
        %v624 = vld [vmem:[#allocation9 + $0xa8] sm:$0xf]
        %v625 = vld [vmem:[#allocation9 + $0xac] sm:$0xf]
        %v626 = vld [vmem:[#allocation9 + $0xb0] sm:$0xf]
        %v627 = vld [vmem:[#allocation9 + $0xb4] sm:$0xf]
        %v628 = vld [vmem:[#allocation9 + $0xb8] sm:$0xf]
        %v629 = vld [vmem:[#allocation9 + $0xbc] sm:$0xf]
        %v630 = vld [vmem:[#allocation9 + $0xc0] sm:$0xf]
        %v631 = vld [vmem:[#allocation9 + $0xc4] sm:$0xf]
        %v632 = vld [vmem:[#allocation9 + $0xc8] sm:$0xf]
        %v633 = vld [vmem:[#allocation9 + $0xcc] sm:$0xf]
        %v634 = vld [vmem:[#allocation9 + $0xd0] sm:$0xf]
        %v635 = vld [vmem:[#allocation9 + $0xd4] sm:$0xf]
        %v636 = vld [vmem:[#allocation9 + $0xd8] sm:$0xf]
        %v637 = vld [vmem:[#allocation9 + $0xdc] sm:$0xf]
        %v638 = vld [vmem:[#allocation9 + $0xe0] sm:$0xf]
        %v639 = vld [vmem:[#allocation9 + $0xe4] sm:$0xf]
        %v640 = vld [vmem:[#allocation9 + $0xe8] sm:$0xf]
        %v641 = vld [vmem:[#allocation9 + $0xec] sm:$0xf]
        %v642 = vld [vmem:[#allocation9 + $0xf0] sm:$0xf]
        %v643 = vld [vmem:[#allocation9 + $0xf4] sm:$0xf]
        %v644 = vld [vmem:[#allocation9 + $0xf8] sm:$0xf]
        %v645 = vld [vmem:[#allocation9 + $0xfc] sm:$0xf]
        %v646 = vld [vmem:[%s5] sm:$0x1]
        %v648 = vperm.slane %v646, 0
        %v714 = vunpack.c.l.b16 %v582
        %v715 = vunpack.c.l.b16 %v583
        %v716 = vunpack.c.l.b16 %v584
        %v717 = vunpack.c.l.b16 %v585
        %v718 = vunpack.c.l.b16 %v586
        %v719 = vunpack.c.l.b16 %v587
        %v720 = vunpack.c.l.b16 %v588
        %v721 = vunpack.c.l.b16 %v589
        %v722 = vunpack.c.l.b16 %v590
        %v723 = vunpack.c.l.b16 %v591
        %v724 = vunpack.c.l.b16 %v592
        %v725 = vunpack.c.l.b16 %v593
        %v726 = vunpack.c.l.b16 %v594
        %v727 = vunpack.c.l.b16 %v595
        %v728 = vunpack.c.l.b16 %v596
        %v729 = vunpack.c.l.b16 %v597
        %v730 = vunpack.c.l.b16 %v598
        %v731 = vunpack.c.l.b16 %v599
        %v732 = vunpack.c.l.b16 %v600
        %v733 = vunpack.c.l.b16 %v601
        %v734 = vunpack.c.l.b16 %v602
        %v735 = vunpack.c.l.b16 %v603
        %v736 = vunpack.c.l.b16 %v604
        %v737 = vunpack.c.l.b16 %v605
        %v738 = vunpack.c.l.b16 %v606
        %v739 = vunpack.c.l.b16 %v607
        %v740 = vunpack.c.l.b16 %v608
        %v741 = vunpack.c.l.b16 %v609
        %v742 = vunpack.c.l.b16 %v610
        %v743 = vunpack.c.l.b16 %v611
        %v744 = vunpack.c.l.b16 %v612
        %v745 = vunpack.c.l.b16 %v613
        %v746 = vunpack.c.l.b16 %v614
        %v747 = vunpack.c.l.b16 %v615
        %v748 = vunpack.c.l.b16 %v616
        %v749 = vunpack.c.l.b16 %v617
        %v750 = vunpack.c.l.b16 %v618
        %v751 = vunpack.c.l.b16 %v619
        %v752 = vunpack.c.l.b16 %v620
        %v753 = vunpack.c.l.b16 %v621
        %v754 = vunpack.c.l.b16 %v622
        %v755 = vunpack.c.l.b16 %v623
        %v756 = vunpack.c.l.b16 %v624
        %v757 = vunpack.c.l.b16 %v625
        %v758 = vunpack.c.l.b16 %v626
        %v759 = vunpack.c.l.b16 %v627
        %v760 = vunpack.c.l.b16 %v628
        %v761 = vunpack.c.l.b16 %v629
        %v762 = vunpack.c.l.b16 %v630
        %v763 = vunpack.c.l.b16 %v631
        %v764 = vunpack.c.l.b16 %v632
        %v765 = vunpack.c.l.b16 %v633
        %v766 = vunpack.c.l.b16 %v634
        %v767 = vunpack.c.l.b16 %v635
        %v768 = vunpack.c.l.b16 %v636
        %v769 = vunpack.c.l.b16 %v637
        %v770 = vunpack.c.l.b16 %v638
        %v771 = vunpack.c.l.b16 %v639
        %v772 = vunpack.c.l.b16 %v640
        %v773 = vunpack.c.l.b16 %v641
        %v774 = vunpack.c.l.b16 %v642
        %v775 = vunpack.c.l.b16 %v643
        %v776 = vunpack.c.l.b16 %v644
        %v777 = vunpack.c.l.b16 %v645
        %v778 = vpack.c.b16 %v715, %v714
        %v779 = vpack.c.b16 %v717, %v716
        %v780 = vpack.c.b16 %v719, %v718
        %v781 = vpack.c.b16 %v721, %v720
        %v782 = vpack.c.b16 %v723, %v722
        %v783 = vpack.c.b16 %v725, %v724
        %v784 = vpack.c.b16 %v727, %v726
        %v785 = vpack.c.b16 %v729, %v728
        %v786 = vpack.c.b16 %v731, %v730
        %v787 = vpack.c.b16 %v733, %v732
        %v788 = vpack.c.b16 %v735, %v734
        %v789 = vpack.c.b16 %v737, %v736
        %v790 = vpack.c.b16 %v739, %v738
        %v791 = vpack.c.b16 %v741, %v740
        %v792 = vpack.c.b16 %v743, %v742
        %v793 = vpack.c.b16 %v745, %v744
        %v794 = vpack.c.b16 %v747, %v746
        %v795 = vpack.c.b16 %v749, %v748
        %v796 = vpack.c.b16 %v751, %v750
        %v797 = vpack.c.b16 %v753, %v752
        %v798 = vpack.c.b16 %v755, %v754
        %v799 = vpack.c.b16 %v757, %v756
        %v800 = vpack.c.b16 %v759, %v758
        %v801 = vpack.c.b16 %v761, %v760
        %v802 = vpack.c.b16 %v763, %v762
        %v803 = vpack.c.b16 %v765, %v764
        %v804 = vpack.c.b16 %v767, %v766
        %v805 = vpack.c.b16 %v769, %v768
        %v806 = vpack.c.b16 %v771, %v770
        %v807 = vpack.c.b16 %v773, %v772
        %v808 = vpack.c.b16 %v775, %v774
        %v809 = vpack.c.b16 %v777, %v776
        %842 = vmatpush.bf16.msra.mxu0 %v785
        %843 = vmatpush.bf16.msra.mxu0 %v784
        %844 = vmatpush.bf16.msra.mxu0 %v783
        %845 = vmatpush.bf16.msra.mxu0 %v782
        %846 = vmatpush.bf16.msra.mxu0 %v781
        %847 = vmatpush.bf16.msra.mxu0 %v780
        %848 = vmatpush.bf16.msra.mxu0 %v779
        %849 = vmatpush.bf16.msra.mxu0 %v778
        %850 = vmatmul.bf16.gmra.mxu0 %v578
        %v851 = vpop.f32.mrf.mxu0
        %v852 = vadd.f32 %v648, %v851
        %v853 = vpop.f32.mrf.mxu0
        %854 = vdwg.mxu0
        %855 = vmatpush.bf16.msra.mxu0 %v793
        %856 = vmatpush.bf16.msra.mxu0 %v792
        %857 = vmatpush.bf16.msra.mxu0 %v791
        %858 = vmatpush.bf16.msra.mxu0 %v790
        %859 = vmatpush.bf16.msra.mxu0 %v789
        %860 = vmatpush.bf16.msra.mxu0 %v788
        %861 = vmatpush.bf16.msra.mxu0 %v787
        %862 = vmatpush.bf16.msra.mxu0 %v786
        %863 = vmatmul.bf16.gmra.mxu0 %v579
        %v864 = vpop.f32.mrf.mxu0
        %v865 = vadd.f32 %v852, %v864
        %v866 = vpop.f32.mrf.mxu0
        %867 = vdwg.mxu0
        %868 = vmatpush.bf16.msra.mxu0 %v801
        %869 = vmatpush.bf16.msra.mxu0 %v800
        %870 = vmatpush.bf16.msra.mxu0 %v799
        %871 = vmatpush.bf16.msra.mxu0 %v798
        %872 = vmatpush.bf16.msra.mxu0 %v797
        %873 = vmatpush.bf16.msra.mxu0 %v796
        %874 = vmatpush.bf16.msra.mxu0 %v795
        %875 = vmatpush.bf16.msra.mxu0 %v794
        %876 = vmatmul.bf16.gmra.mxu0 %v580
        %v877 = vpop.f32.mrf.mxu0
        %v878 = vadd.f32 %v865, %v877
        %v879 = vpop.f32.mrf.mxu0
        %880 = vdwg.mxu0
        %881 = vmatpush.bf16.msra.mxu0 %v809
        %882 = vmatpush.bf16.msra.mxu0 %v808
        %883 = vmatpush.bf16.msra.mxu0 %v807
        %884 = vmatpush.bf16.msra.mxu0 %v806
        %885 = vmatpush.bf16.msra.mxu0 %v805
        %886 = vmatpush.bf16.msra.mxu0 %v804
        %887 = vmatpush.bf16.msra.mxu0 %v803
        %888 = vmatpush.bf16.msra.mxu0 %v802
        %889 = vmatmul.bf16.gmra.mxu0 %v581
        %v890 = vpop.f32.mrf.mxu0
        %v891 = vadd.f32 %v878, %v890
        %v892 = vpop.f32.mrf.mxu0
        %893 = vdwg.mxu0
        %894 = vst [vmem:[%s317] sm:$0xff] %v891
        %s895 = sand.u32 %s165, 1
        %s896 = scalar_lea.sflag [#allocation5], %s895
        %s897 = sand.u32 %s165, 1
        %s898 = smul.addr %s897, 8
        %s899 = scalar_lea.vmem [#allocation11], %s898
        // Predicated region
        $region61: #{tpu_custom_call.1} parent=43 // pred_check
          %p900 = pneg %p175
        $region62: #{tpu_custom_call.1} parent=43 // pred_check_branch
          %902 = sbr.rel (%p900) target = $region64
        $region63: #{tpu_custom_call.1} parent=43 // pred_region
          %904 = vsyncadd %s896, 0
          %s905 = smul.addr %s26, 8
          %s906 = scalar_lea.hbm %s6, %s905
          %s908 = sshll.u32 %s899, 4
          %s909 = int_to_ptr.vmem [resolvable:$true] %s908
          %s910 = sshll.u32 %s906, 4
          %s911 = int_to_ptr.hbm [resolvable:$true] %s910
          %913 = dma.vmem_to_hbm [thread:$0]  %s909, 128, %s911, %s896
        $region64: #{tpu_custom_call.1} parent=43 // pred_fallthru
          _
      $region44: #{tpu_custom_call.1} parent=5 // pred_fallthru
        _
      %p914 = scmp.le.s32.totalorder 2, %s21
      // Predicated region
      $region65: #{tpu_custom_call.1} parent=5 // pred_check
        %p915 = pneg %p914
      $region66: #{tpu_custom_call.1} parent=5 // pred_check_branch
        %917 = sbr.rel (%p915) target = $region68
      $region67: #{tpu_custom_call.1} parent=5 // pred_region
        %s918 = ssub.s32 %s21, 2
        // Predicated region
        $region69: #{tpu_custom_call.1} parent=67 // pred_check
          %p919 = pneg %p181
        $region70: #{tpu_custom_call.1} parent=67 // pred_check_branch
          %921 = sbr.rel (%p919) target = $region72
        $region71: #{tpu_custom_call.1} parent=67 // pred_region
          %s922 = sand.u32 %s166, 1
          %s923 = scalar_lea.sflag [#allocation5], %s922
          %s924 = sand.u32 %s166, 1
          %s925 = smul.addr %s924, 8
          %s926 = scalar_lea.vmem [#allocation11], %s925
          %928 = dma.done %s923, 128
        $region72: #{tpu_custom_call.1} parent=67 // pred_fallthru
          _
      $region68: #{tpu_custom_call.1} parent=5 // pred_fallthru
        _
    $region6: #{tpu_custom_call.1} parent=1 // loop_footer
      %s25 = sadd.s32 1, %s21
    $region7: #{tpu_custom_call.1} parent=1 // loop_footer_branch
      %20 = sbr.rel target = $region3
    $region8: #{tpu_custom_call.1} parent=1 // loop_exit
      _
    %929 = vsyncpa [#allocation4], 1
    %s930 = scalar_lea.sflag [#allocation4], 1
    %931 = vsyncpa %s930, 1
    %932 = vsyncpa [#allocation7], 1
    %933 = vsyncpa [#allocation10], 1
    %934 = vsyncpa [#allocation5], 1
    %s935 = scalar_lea.sflag [#allocation5], 1
    %936 = vsyncpa %s935, 1

</llo_original>
